<compile_context>
chip_gen: v5e
topology: v5e:2x2
jax: 0.10.0
libtpu: 0.0.40
codegen_flags: <defaults>
</compile_context>

<pallas_src>
import functools

import jax
import jax.numpy as jnp
from jax import lax
from jax.experimental import pallas as pl
from jax.experimental.pallas import tpu as pltpu


def _round_up(x, m):
    return ((x + m - 1) // m) * m


def _ce_kernel(logits_ref, labels_ref, loss_ref, *, n_rows, tile_rows, ignore_index):
    """Per-row masked cross-entropy loss for one (tile_rows, C) tile."""
    i = pl.program_id(0)

    x = logits_ref[...].astype(jnp.float32)          # (TN, C), f32 math
    lbl = labels_ref[...]                            # (TN, 1) int32

    # Numerically-stable log-softmax denominator per row.
    m = jnp.max(x, axis=-1, keepdims=True)                              # (TN, 1)
    lse = jnp.log(jnp.sum(jnp.exp(x - m), axis=-1, keepdims=True)) + m  # (TN, 1)

    # Gather logits[row, label[row]] via iota compare (no dynamic gather on TPU).
    class_iota = lax.broadcasted_iota(jnp.int32, x.shape, 1)            # (TN, C)
    picked = jnp.sum(jnp.where(class_iota == lbl, x, 0.0),
                     axis=-1, keepdims=True)                            # (TN, 1)

    # Mask rows past the real row count (cdiv-padded last tile) and rows whose
    # label equals ignore_index (PyTorch default -100).
    row_iota = lax.broadcasted_iota(jnp.int32, (tile_rows, 1), 0)
    in_range = (i * tile_rows + row_iota) < n_rows
    valid = jnp.logical_and(in_range, lbl != ignore_index)

    loss_ref[...] = jnp.where(valid, lse - picked, 0.0)


def cross_entropy_loss(logits, labels, *, ignore_index=-100, tile_rows=None,
                       target_block_bytes=4 * 1024 * 1024):
    """Mean cross-entropy over all rows, matching F.cross_entropy(logits, labels)."""
    # glue: flatten leading dims (mirrors the PyTorch reshape for >2D inputs)
    if logits.ndim > 2:
        logits = logits.reshape(-1, logits.shape[-1])
        labels = labels.reshape(-1)

    n, c = logits.shape
    labels_flat = labels.astype(jnp.int32).reshape(n)
    labels2d = labels_flat.reshape(n, 1)

    # Row-tile sizing: ~target_block_bytes of logits per block (double-buffered
    # by the pipeline), rounded to a multiple of 8 sublanes, clamped to N.
    if tile_rows is None:
        bytes_per_row = c * jnp.dtype(logits.dtype).itemsize
        tr = max(8, (target_block_bytes // max(bytes_per_row, 1)) // 8 * 8)
        tile_rows = int(min(tr, _round_up(n, 8)))
    else:
        tile_rows = _round_up(int(tile_rows), 8)

    num_tiles = pl.cdiv(n, tile_rows)
    n_pad = num_tiles * tile_rows

    kernel = functools.partial(
        _ce_kernel, n_rows=n, tile_rows=tile_rows, ignore_index=ignore_index)

    per_row = pl.pallas_call(
        kernel,
        out_shape=jax.ShapeDtypeStruct((n_pad, 1), jnp.float32),
        grid_spec=pltpu.PrefetchScalarGridSpec(
            num_scalar_prefetch=0,
            grid=(num_tiles,),
            in_specs=[
                pl.BlockSpec((tile_rows, c), lambda i: (i, 0)),
                pl.BlockSpec((tile_rows, 1), lambda i: (i, 0)),
            ],
            out_specs=pl.BlockSpec((tile_rows, 1), lambda i: (i, 0)),
        ),
        compiler_params=pltpu.CompilerParams(
            # Fully parallel row loop: no carried accumulator, so megacore (v7x)
            # can shard the grid across TensorCores.
            dimension_semantics=("parallel",),
            # Explicit scoped-VMEM limit: safe on v5e/v6e/v7x, above v5e's
            # 16 MiB default so the big row tiles are accepted.
            vmem_limit_bytes=32 * 1024 * 1024,
        ),
    )(logits, labels2d)

    # Final reduction + mean over non-ignored rows (tiny; done by XLA).
    denom = jnp.sum((labels_flat != ignore_index).astype(jnp.float32))
    return jnp.sum(per_row) / denom


def _reference(flat_logits, flat_labels, ignore_index=-100):
    logp = jax.nn.log_softmax(flat_logits.astype(jnp.float32), axis=-1)
    safe = jnp.where(flat_labels == ignore_index, 0, flat_labels)
    nll = -jnp.take_along_axis(logp, safe[:, None].astype(jnp.int32), axis=-1)[:, 0]
    mask = (flat_labels != ignore_index).astype(jnp.float32)
    return jnp.sum(nll * mask) / jnp.sum(mask)


if __name__ == "__main__":
    key = jax.random.PRNGKey(0)
    k1, k2, k3, k4 = jax.random.split(key, 4)

    # Test 1: small 3-D logits (batch, seq, classes), f32.
    batch, seq, num_classes = 2, 8, 32
    logits = jax.random.normal(k1, (batch, seq, num_classes), dtype=jnp.float32)
    labels = jax.random.randint(k2, (batch, seq), 0, num_classes, dtype=jnp.int32)
    loss = jax.block_until_ready(cross_entropy_loss(logits, labels))
    ref = _reference(logits.reshape(-1, num_classes), labels.reshape(-1))
    assert jnp.allclose(loss, ref, atol=1e-5, rtol=1e-5), (loss, ref)

    # Test 2: awkward row count (not a multiple of 8) + ignore_index=-100 rows.
    n2, c2 = 37, 50
    logits2 = jax.random.normal(k3, (n2, c2), dtype=jnp.float32)
    labels2 = jax.random.randint(k4, (n2,), 0, c2, dtype=jnp.int32)
    labels2 = labels2.at[jnp.array([0, 5, 20])].set(-100)
    loss2 = jax.block_until_ready(cross_entropy_loss(logits2, labels2))
    ref2 = _reference(logits2, labels2)
    assert jnp.allclose(loss2, ref2, atol=1e-5, rtol=1e-5), (loss2, ref2)

    # Test 3: bf16 logits straight from HBM (no wrapper cast), f32 math in-kernel.
    logits3 = logits.astype(jnp.bfloat16)
    loss3 = jax.block_until_ready(cross_entropy_loss(logits3, labels))
    ref3 = _reference(logits3.astype(jnp.float32).reshape(-1, num_classes),
                      labels.reshape(-1))
    assert jnp.allclose(loss3, ref3, atol=1e-4, rtol=1e-4), (loss3, ref3)

    print("KERNEL_OK")
</pallas_src>

<mosaic_0001>
module attributes {stable_mosaic.version = 11 : i64} {
  func.func @_ce_kernel(%arg0: i32, %arg1: memref<16x32xf32, #tpu.memory_space<vmem>>, %arg2: memref<16x1xi32, #tpu.memory_space<vmem>>, %arg3: memref<16x1xf32, #tpu.memory_space<vmem>>) attributes {dimension_semantics = [#tpu.dimension_semantics<parallel>], iteration_bounds = array<i64: 1>, scalar_prefetch = 0 : i64, scratch_operands = 0 : i64, tpu.core_type = #tpu.core_type<tc>, window_params = [{transform_indices = @transform_0, window_bounds = array<i64: 16, 32>}, {transform_indices = @transform_1, window_bounds = array<i64: 16, 1>}, {transform_indices = @transform_2, window_bounds = array<i64: 16, 1>}]} {
    %c0 = arith.constant 0 : index
    %c0_0 = arith.constant 0 : index
    %0 = vector.load %arg1[%c0, %c0_0] : memref<16x32xf32, #tpu.memory_space<vmem>>, vector<16x32xf32>
    %c0_1 = arith.constant 0 : index
    %c0_2 = arith.constant 0 : index
    %1 = vector.load %arg2[%c0_1, %c0_2] : memref<16x1xi32, #tpu.memory_space<vmem>>, vector<16x1xi32>
    %cst = arith.constant dense<0xFF800000> : vector<16xf32>
    %2 = vector.multi_reduction <maximumf>, %0, %cst [1] : vector<16x32xf32> to vector<16xf32>
    %3 = vector.shape_cast %2 : vector<16xf32> to vector<16x1xf32>
    %4 = vector.broadcast %3 : vector<16x1xf32> to vector<16x32xf32>
    %5 = arith.subf %0, %4 : vector<16x32xf32>
    %6 = math.exp %5 : vector<16x32xf32>
    %cst_3 = arith.constant dense<0.000000e+00> : vector<16xf32>
    %7 = vector.multi_reduction <add>, %6, %cst_3 [1] : vector<16x32xf32> to vector<16xf32>
    %8 = vector.shape_cast %7 : vector<16xf32> to vector<16x1xf32>
    %9 = math.log %8 : vector<16x1xf32>
    %10 = arith.addf %9, %3 : vector<16x1xf32>
    %11 = tpu.iota {dimensions = array<i32: 1>} : vector<16x32xi32>
    %12 = vector.broadcast %1 : vector<16x1xi32> to vector<16x32xi32>
    %13 = arith.cmpi eq, %11, %12 : vector<16x32xi32>
    %cst_4 = arith.constant 0.000000e+00 : f32
    %14 = vector.broadcast %cst_4 : f32 to vector<16x32xf32>
    %15 = arith.select %13, %0, %14 : vector<16x32xi1>, vector<16x32xf32>
    %cst_5 = arith.constant dense<0.000000e+00> : vector<16xf32>
    %16 = vector.multi_reduction <add>, %15, %cst_5 [1] : vector<16x32xf32> to vector<16xf32>
    %17 = vector.shape_cast %16 : vector<16xf32> to vector<16x1xf32>
    %18 = tpu.iota {dimensions = array<i32: 0>} : vector<16x1xi32>
    %c16_i32 = arith.constant 16 : i32
    %19 = arith.muli %arg0, %c16_i32 : i32
    %20 = vector.broadcast %19 : i32 to vector<16x1xi32>
    %21 = arith.addi %20, %18 : vector<16x1xi32>
    %c16_i32_6 = arith.constant 16 : i32
    %22 = vector.broadcast %c16_i32_6 : i32 to vector<16x1xi32>
    %23 = arith.cmpi slt, %21, %22 : vector<16x1xi32>
    %c-100_i32 = arith.constant -100 : i32
    %24 = vector.broadcast %c-100_i32 : i32 to vector<16x1xi32>
    %25 = arith.cmpi ne, %1, %24 : vector<16x1xi32>
    %26 = arith.andi %23, %25 : vector<16x1xi1>
    %27 = arith.subf %10, %17 : vector<16x1xf32>
    %cst_7 = arith.constant 0.000000e+00 : f32
    %28 = vector.broadcast %cst_7 : f32 to vector<16x1xf32>
    %29 = arith.select %26, %27, %28 : vector<16x1xi1>, vector<16x1xf32>
    %c0_8 = arith.constant 0 : index
    %c0_9 = arith.constant 0 : index
    %30 = vector.load %arg3[%c0_8, %c0_9] : memref<16x1xf32, #tpu.memory_space<vmem>>, vector<16x1xf32>
    tpu.vector_store %arg3[%c0_8, %c0_9], %29 {strides = array<i32>} : memref<16x1xf32, #tpu.memory_space<vmem>>, vector<16x1xf32>,
    return
  }
  func.func @transform_0(%arg0: i32) -> (i32, i32) {
    %c0_i32 = arith.constant 0 : i32
    %c0_i32_0 = arith.constant 0 : i32
    return %arg0, %c0_i32 : i32, i32
  }
  func.func @transform_1(%arg0: i32) -> (i32, i32) {
    %c0_i32 = arith.constant 0 : i32
    %c0_i32_0 = arith.constant 0 : i32
    return %arg0, %c0_i32 : i32, i32
  }
  func.func @transform_2(%arg0: i32) -> (i32, i32) {
    %c0_i32 = arith.constant 0 : i32
    %c0_i32_0 = arith.constant 0 : i32
    return %arg0, %c0_i32 : i32, i32
  }
}

</mosaic_0001>

<llo_original>
// kernel: tpu_custom_call.1
$region0: #{tpu_custom_call.1}
  #allocation0 [shape = 'u32[]', space=smem, size = 0x4, offset = 0x4, fixed_abs, tag = 'smem constant byte address 0x4 - core index']
  #allocation1 [shape = 'u32[72,128]{1,0:T(1,128)}', space=vmem, size = 0x9000, scoped, tag = 'internal scratch']
  %s0 = inlined_call_operand.vmem [shape: f32[16,32], index: 0, kind: input, shape index: {}]
  %s1 = inlined_call_operand.vmem [shape: s32[16,1], index: 1, kind: input, shape index: {}]
  %s2 = inlined_call_operand.vmem [shape: f32[16,1], index: 2, kind: output, shape index: {}]
  %s3 = sld [smem:[#allocation0]]
  $region18: #{tpu_custom_call.1} parent=0
    _
  %s5 = ssub.s32 1, %s3
  %s6 = scalar_select 0, %s5, %s3
  // Predicated region
  $region2: #{tpu_custom_call.1} parent=0 // pred_check
    _
  $region3: #{tpu_custom_call.1} parent=0 // pred_check_branch
    %8 = sbr.rel (0) target = $region5
  $region4: #{tpu_custom_call.1} parent=0 // pred_region
    _
  $region5: #{tpu_custom_call.1} parent=0 // pred_fallthru
    _
  // Predicated region
  $region6: #{tpu_custom_call.1} parent=0 // pred_check
    _
  $region7: #{tpu_custom_call.1} parent=0 // pred_check_branch
    %10 = sbr.rel (0) target = $region9
  $region8: #{tpu_custom_call.1} parent=0 // pred_region
    _
  $region9: #{tpu_custom_call.1} parent=0 // pred_fallthru
    _
  %v11 = vld [vmem:[%s0] sm:$0xff]
  %v12 = vld [vmem:[%s0 + $0x8] sm:$0xff]
  %v13 = vld [vmem:[%s1] sm:$0xff]
  %v14 = vld [vmem:[%s1 + $0x8] sm:$0xff]
  %vm15 = vcmask 261120
  %v16 = vsel %vm15, %v11, -inf
  %17 = vmax.xlane.f32.xlu0 %v16
  %v18 = vpop.xlane.xlu0 %17
  %v19 = vsel %vm15, %v12, -inf
  %20 = vmax.xlane.f32.xlu0 %v19
  %v21 = vpop.xlane.xlu0 %20
  %v22 = vsub.f32 %v11, %v18
  %v23 = vsub.f32 %v12, %v21
  %v24 = vmul.f32 %v22, 1.442695
  %v25 = vpow.pop %v24
  %v26 = vmul.f32 %v23, 1.442695
  %v27 = vpow.pop %v26
  %v28 = vsel %vm15, %v25, 0.0
  %29 = vadd.xlane.f32.xlu0 %v28
  %v30 = vpop.xlane.xlu0 %29
  %v31 = vsel %vm15, %v27, 0.0
  %32 = vadd.xlane.f32.xlu0 %v31
  %v33 = vpop.xlane.xlu0 %32
  %v34 = vlog2.pop %v30
  %v35 = vmul.f32 %v34, 0.6931472
  %v36 = vlog2.pop %v33
  %v37 = vmul.f32 %v36, 0.6931472
  %v38 = vadd.f32 %v35, %v18
  %v39 = vadd.f32 %v37, %v21
  %v40 = vlaneseq
  %v41 = vand.u32 %v40, 127
  %42 = vset.pattern.permute.xlu0 0
  %43 = vperm.xlu0 %42, %v13
  %v44 = vpop.permute.xlu0 %43
  %45 = vset.pattern.permute.xlu0 0
  %46 = vperm.xlu0 %45, %v14
  %v47 = vpop.permute.xlu0 %46
  %vm48 = vcmp.eq.s32.totalorder %v41, %v44
  %vm49 = vcmp.eq.s32.totalorder %v41, %v47
  %v50 = vsel %vm48, %v11, 0.0
  %v51 = vsel %vm49, %v12, 0.0
  %v52 = vsel %vm15, %v50, 0.0
  %53 = vadd.xlane.f32.xlu0 %v52
  %v54 = vpop.xlane.xlu0 %53
  %v55 = vsel %vm15, %v51, 0.0
  %56 = vadd.xlane.f32.xlu0 %v55
  %v57 = vpop.xlane.xlu0 %56
  %v58 = vlaneseq
  %v59 = vshrl.u32 %v58, 7
  %v60 = vadd.s32 %v59, 8
  %s61 = smul.u32 0, 16
  %v62 = vstv %s61
  %v63 = vadd.s32 %v62, %v59
  %v64 = vadd.s32 %v62, %v60
  %vm65 = vcmp.lt.s32.totalorder %v63, 16
  %vm66 = vcmp.lt.s32.totalorder %v64, 16
  %vm67 = vcmp.ne.s32.totalorder %v13, 4294967196
  %vm68 = vcmp.ne.s32.totalorder %v14, 4294967196
  %vm69 = vmand %vm65, %vm67
  %vm70 = vmand %vm66, %vm68
  %v71 = vsub.f32 %v38, %v54
  %v72 = vsub.f32 %v39, %v57
  %v73 = vsel %vm69, %v71, 0.0
  %v74 = vsel %vm70, %v72, 0.0
  %vm75 = vcmask 7168
  %76 = vst.msk [vmem:[%s2] sm:$0xff] %vm75, %v73
  %77 = vst.msk [vmem:[%s2 + $0x8] sm:$0xff] %vm75, %v74
  // Predicated region
  $region10: #{tpu_custom_call.1} parent=0 // pred_check
    _
  $region11: #{tpu_custom_call.1} parent=0 // pred_check_branch
    %79 = sbr.rel (0) target = $region13
  $region12: #{tpu_custom_call.1} parent=0 // pred_region
    _
  $region13: #{tpu_custom_call.1} parent=0 // pred_fallthru
    _
  // Predicated region
  $region14: #{tpu_custom_call.1} parent=0 // pred_check
    _
  $region15: #{tpu_custom_call.1} parent=0 // pred_check_branch
    %81 = sbr.rel (0) target = $region17
  $region16: #{tpu_custom_call.1} parent=0 // pred_region
    _
  $region17: #{tpu_custom_call.1} parent=0 // pred_fallthru
    _

</llo_original>
